<compile_context>
chip_gen: v5e
topology: v5e:2x2
jax: 0.10.0
libtpu: 0.0.40
codegen_flags: <defaults>
</compile_context>

<pallas_src>
import functools
import math

import jax
import jax.numpy as jnp
from jax import lax
from jax.experimental import pallas as pl
from jax.experimental.pallas import tpu as pltpu


# ---------------------------------------------------------------------------
# Kernel 1: linear layer  y = x @ W + b   (W already pre-transposed to [in, out]).
# ---------------------------------------------------------------------------
def _linear_kernel(x_ref, w_ref, b_ref, o_ref):
    x = x_ref[...].astype(jnp.bfloat16)        # bf16 MXU operands,
    w = w_ref[...].astype(jnp.bfloat16)        # f32 accumulation
    y = lax.dot_general(x, w, dimension_numbers=(((1,), (0,)), ((), ())),
                        preferred_element_type=jnp.float32)
    y = y + b_ref[...].astype(jnp.float32)
    o_ref[...] = y.astype(o_ref.dtype)


def linear(x, w_t, b, *, out_dtype=None, tm=256, tn=512):
    """x: (M, K); w_t: (K, N) pre-transposed nn.Linear weight; b: (1, N)."""
    M, K = x.shape
    K2, N = w_t.shape
    assert K == K2
    out_dtype = out_dtype if out_dtype is not None else x.dtype
    tm = min(tm, M)                    # trailing partial blocks are masked (cdiv grid)
    tn = min(tn, N)
    return pl.pallas_call(
        _linear_kernel,
        out_shape=jax.ShapeDtypeStruct((M, N), out_dtype),
        grid_spec=pltpu.PrefetchScalarGridSpec(
            num_scalar_prefetch=0,
            grid=(pl.cdiv(M, tm), pl.cdiv(N, tn)),
            in_specs=[
                pl.BlockSpec((tm, K), lambda i, j: (i, 0)),
                pl.BlockSpec((K, tn), lambda i, j: (0, j)),
                pl.BlockSpec((1, tn), lambda i, j: (0, j)),
            ],
            out_specs=pl.BlockSpec((tm, tn), lambda i, j: (i, j)),
        ),
        compiler_params=pltpu.CompilerParams(
            dimension_semantics=("parallel", "parallel")),
    )(x, w_t, b)


# ---------------------------------------------------------------------------
# Kernel 2: attention core for one (batch, head-group):
#           softmax(QK^T + mask) V per head, deferred normalization.
# ---------------------------------------------------------------------------
def _attention_kernel(qkv_ref, mask_ref, o_ref, *, heads_per_block, head_dim):
    # qkv_ref: (1, S, 3, hb*D); mask_ref: (1, 1, S); o_ref: (1, S, hb*D)
    mask = mask_ref[0].astype(jnp.float32)                     # (1, S) broadcasts over queries
    ctxs = []
    for h in range(heads_per_block):                           # static unroll over heads
        lo, hi = h * head_dim, (h + 1) * head_dim
        q = qkv_ref[0, :, 0, lo:hi].astype(jnp.bfloat16)       # (S, D); 1/sqrt(D) folded into Wq
        k = qkv_ref[0, :, 1, lo:hi].astype(jnp.bfloat16)
        v = qkv_ref[0, :, 2, lo:hi].astype(jnp.bfloat16)
        s = lax.dot_general(q, k, dimension_numbers=(((1,), (1,)), ((), ())),
                            preferred_element_type=jnp.float32)          # (S, S) scores
        s = s + mask
        m = jnp.max(s, axis=-1, keepdims=True)                 # numerically stable
        e = jnp.exp(s - m)                                     # unnormalized probs
        l = jnp.sum(e, axis=-1, keepdims=True)
        # TODO(synk): attention_probs dropout is identity in eval mode.
        ctx = lax.dot_general(e.astype(jnp.bfloat16), v,
                              dimension_numbers=(((1,), (0,)), ((), ())),
                              preferred_element_type=jnp.float32)         # (S, D)
        ctxs.append(ctx * pl.reciprocal(l, approx=True))       # deferred softmax normalization
    # Single lane-dense store of the whole head group's context.
    o_ref[0] = jnp.concatenate(ctxs, axis=-1).astype(o_ref.dtype)


def _pick_heads_per_block(num_heads, head_dim):
    """Smallest head group with a 128-aligned lane width (grown to >=256 lanes when
    possible); falls back to all heads (width == H, always a legal block)."""
    best = num_heads
    for hb in range(1, num_heads):
        if num_heads % hb:
            continue
        width = hb * head_dim
        if width % 128:
            continue
        best = hb
        if width >= 256:
            break
    return best


def attention_core(qkv, mask, *, num_heads, head_dim):
    """qkv: (B, S, 3, H); mask: (B, 1, S) additive; returns context (B, S, H)."""
    B, S, _, H = qkv.shape
    hb = _pick_heads_per_block(num_heads, head_dim)
    hw = hb * head_dim
    kernel = functools.partial(_attention_kernel, heads_per_block=hb, head_dim=head_dim)
    return pl.pallas_call(
        kernel,
        out_shape=jax.ShapeDtypeStruct((B, S, H), qkv.dtype),
        grid_spec=pltpu.PrefetchScalarGridSpec(
            num_scalar_prefetch=0,
            grid=(B, num_heads // hb),
            in_specs=[
                pl.BlockSpec((1, S, 3, hw), lambda b, g: (b, 0, 0, g)),
                pl.BlockSpec((1, 1, S), lambda b, g: (b, 0, 0)),
            ],
            out_specs=pl.BlockSpec((1, S, hw), lambda b, g: (b, 0, g)),
        ),
        compiler_params=pltpu.CompilerParams(
            dimension_semantics=("parallel", "parallel")),
    )(qkv, mask)


# ---------------------------------------------------------------------------
# Kernel 3: BertSelfOutput = dense(context) + residual, then LayerNorm.
# ---------------------------------------------------------------------------
def _self_output_kernel(ctx_ref, res_ref, w_ref, b_ref, g_ref, beta_ref, o_ref, *, eps):
    y = lax.dot_general(ctx_ref[...].astype(jnp.bfloat16),
                        w_ref[...].astype(jnp.bfloat16),
                        dimension_numbers=(((1,), (0,)), ((), ())),
                        preferred_element_type=jnp.float32)
    # TODO(synk): hidden dropout is identity in eval mode.
    z = y + b_ref[...].astype(jnp.float32) + res_ref[...].astype(jnp.float32)
    mu = jnp.mean(z, axis=-1, keepdims=True)
    zc = z - mu
    var = jnp.mean(zc * zc, axis=-1, keepdims=True)
    zn = zc * lax.rsqrt(var + eps)
    out = zn * g_ref[...].astype(jnp.float32) + beta_ref[...].astype(jnp.float32)
    o_ref[...] = out.astype(o_ref.dtype)


def self_output(ctx2d, res2d, w_t, b, gamma, beta, eps, *, out_dtype=None, tm=256):
    M, H = ctx2d.shape
    out_dtype = out_dtype if out_dtype is not None else res2d.dtype
    tm = min(tm, M)
    kernel = functools.partial(_self_output_kernel, eps=float(eps))
    row_spec = pl.BlockSpec((tm, H), lambda i: (i, 0))
    vec_spec = pl.BlockSpec((1, H), lambda i: (0, 0))
    # NOTE: on v7x the constant-index (H, H) weight could use pipeline_mode=pl.Buffered(1)
    # to save one resident VMEM copy; omitted here for broad jax-version compatibility.
    return pl.pallas_call(
        kernel,
        out_shape=jax.ShapeDtypeStruct((M, H), out_dtype),
        grid_spec=pltpu.PrefetchScalarGridSpec(
            num_scalar_prefetch=0,
            grid=(pl.cdiv(M, tm),),
            in_specs=[row_spec, row_spec,
                      pl.BlockSpec((w_t.shape[0], H), lambda i: (0, 0)),
                      vec_spec, vec_spec, vec_spec],
            out_specs=row_spec,
        ),
        compiler_params=pltpu.CompilerParams(dimension_semantics=("parallel",)),
    )(ctx2d, res2d, w_t, b, gamma, beta)


# ---------------------------------------------------------------------------
# Parameter preprocessing (one-time, hoisted out of the forward pass).
# ---------------------------------------------------------------------------
def prepare_params(params, *, param_dtype=jnp.bfloat16):
    """Concat Q/K/V into one fused projection, fold 1/sqrt(head_dim) into Q, pre-transpose
    weights to [in, out], and store matmul weights in bf16 (halves weight HBM traffic)."""
    NH = params["num_attention_heads"]
    H = params["wq"].shape[0]
    D = H // NH
    scale = 1.0 / math.sqrt(D)
    wqkv = jnp.concatenate([params["wq"] * scale, params["wk"], params["wv"]], axis=0)  # (3H, H)
    bqkv = jnp.concatenate([params["bq"] * scale, params["bk"], params["bv"]], axis=0)  # (3H,)
    return {
        "num_attention_heads": NH,
        "head_dim": D,
        "wqkv_t": wqkv.T.astype(param_dtype),                    # (H, 3H)  [in, out]
        "bqkv": bqkv.reshape(1, 3 * H).astype(jnp.float32),
        "wo_t": params["wo"].T.astype(param_dtype),              # (H, H)   [in, out]
        "bo": params["bo"].reshape(1, H).astype(jnp.float32),
        "ln_gamma": params["ln_gamma"].reshape(1, H).astype(jnp.float32),
        "ln_beta": params["ln_beta"].reshape(1, H).astype(jnp.float32),
        "ln_eps": float(params["ln_eps"]),
    }


# ---------------------------------------------------------------------------
# Full BertAttention forward.
# ---------------------------------------------------------------------------
def bert_attention(hidden_states, prep, attention_mask=None):
    """hidden_states: (B, S, H); attention_mask: additive (B, S) or (B, 1, 1, S) or None."""
    B, S, H = hidden_states.shape
    NH, D = prep["num_attention_heads"], prep["head_dim"]
    x2d = hidden_states.reshape(B * S, H)

    # Fused QKV projection (one activation pass); bf16 intermediate halves HBM traffic.
    qkv = linear(x2d, prep["wqkv_t"], prep["bqkv"], out_dtype=jnp.bfloat16)   # (B*S, 3H)
    qkv = qkv.reshape(B, S, 3, H)                                             # free reshape

    if attention_mask is None:
        mask = jnp.zeros((B, 1, S), dtype=jnp.float32)
    else:
        mask = attention_mask.reshape(B, 1, S).astype(jnp.float32)

    ctx = attention_core(qkv, mask, num_heads=NH, head_dim=D)                 # (B, S, H)
    ctx2d = ctx.reshape(B * S, H)                                             # free reshape

    out2d = self_output(ctx2d, x2d, prep["wo_t"], prep["bo"],
                        prep["ln_gamma"], prep["ln_beta"], prep["ln_eps"],
                        out_dtype=hidden_states.dtype)
    return out2d.reshape(B, S, H)


# ---------------------------------------------------------------------------
# Pure-JAX f32 reference mirroring the PyTorch module.
# ---------------------------------------------------------------------------
def bert_attention_ref(hidden_states, params, attention_mask=None):
    B, S, H = hidden_states.shape
    NH = params["num_attention_heads"]
    D = H // NH
    x = hidden_states
    q = x @ params["wq"].T + params["bq"]
    k = x @ params["wk"].T + params["bk"]
    v = x @ params["wv"].T + params["bv"]

    def t(y):
        return y.reshape(B, S, NH, D).transpose(0, 2, 1, 3)

    qh, kh, vh = t(q), t(k), t(v)
    scores = jnp.einsum("bhqd,bhkd->bhqk", qh, kh) / math.sqrt(D)
    if attention_mask is not None:
        scores = scores + attention_mask.reshape(B, 1, 1, S)
    probs = jax.nn.softmax(scores, axis=-1)
    ctx = jnp.einsum("bhqk,bhkd->bhqd", probs, vh)
    ctx = ctx.transpose(0, 2, 1, 3).reshape(B, S, H)
    y = ctx @ params["wo"].T + params["bo"] + x
    mu = y.mean(-1, keepdims=True)
    var = ((y - mu) ** 2).mean(-1, keepdims=True)
    return (y - mu) / jnp.sqrt(var + params["ln_eps"]) * params["ln_gamma"] + params["ln_beta"]


if __name__ == "__main__":
    B, S, H, NH = 2, 8, 32, 4   # small config: batch=2, seq=8, hidden=32, heads=4
    key = jax.random.PRNGKey(0)
    ks = jax.random.split(key, 10)

    hidden_states = jax.random.normal(ks[0], (B, S, H), dtype=jnp.float32)
    std = 0.02
    params = {
        "num_attention_heads": NH,
        "wq": std * jax.random.normal(ks[1], (H, H), dtype=jnp.float32),
        "wk": std * jax.random.normal(ks[2], (H, H), dtype=jnp.float32),
        "wv": std * jax.random.normal(ks[3], (H, H), dtype=jnp.float32),
        "wo": std * jax.random.normal(ks[4], (H, H), dtype=jnp.float32),
        "bq": 0.1 * jax.random.normal(ks[5], (H,), dtype=jnp.float32),
        "bk": 0.1 * jax.random.normal(ks[6], (H,), dtype=jnp.float32),
        "bv": 0.1 * jax.random.normal(ks[7], (H,), dtype=jnp.float32),
        "bo": 0.1 * jax.random.normal(ks[8], (H,), dtype=jnp.float32),
        "ln_gamma": 1.0 + 0.05 * jax.random.normal(ks[9], (H,), dtype=jnp.float32),
        "ln_beta": jnp.zeros((H,), dtype=jnp.float32),
        "ln_eps": 1e-12,
    }
    # Additive attention mask (HF convention): 0 = keep, -10000 = masked.
    attn_mask = jnp.zeros((B, S), dtype=jnp.float32).at[1, S - 2:].set(-10000.0)

    prep = prepare_params(params)
    out = bert_attention(hidden_states, prep, attn_mask)
    out = jax.block_until_ready(out)

    ref = bert_attention_ref(hidden_states, params, attn_mask)
    assert out.shape == (B, S, H)
    # Tolerance accounts for bf16 MXU operands / bf16 intermediates + approx reciprocal
    # (accumulation, residual and LayerNorm are in f32).
    assert jnp.allclose(out, ref, atol=2e-2, rtol=2e-2), float(jnp.max(jnp.abs(out - ref)))
    print("KERNEL_OK")
</pallas_src>

<mosaic_0001>
module attributes {stable_mosaic.version = 11 : i64} {
  func.func @_linear_kernel(%arg0: i32, %arg1: i32, %arg2: memref<16x32xf32, #tpu.memory_space<vmem>>, %arg3: memref<32x96xbf16, #tpu.memory_space<vmem>>, %arg4: memref<1x96xf32, #tpu.memory_space<vmem>>, %arg5: memref<16x96xbf16, #tpu.memory_space<vmem>>) attributes {dimension_semantics = [#tpu.dimension_semantics<parallel>, #tpu.dimension_semantics<parallel>], iteration_bounds = array<i64: 1, 1>, scalar_prefetch = 0 : i64, scratch_operands = 0 : i64, tpu.core_type = #tpu.core_type<tc>, window_params = [{transform_indices = @transform_0, window_bounds = array<i64: 16, 32>}, {transform_indices = @transform_1, window_bounds = array<i64: 32, 96>}, {transform_indices = @transform_2, window_bounds = array<i64: 1, 96>}, {transform_indices = @transform_3, window_bounds = array<i64: 16, 96>}]} {
    %c0 = arith.constant 0 : index
    %c0_0 = arith.constant 0 : index
    %0 = vector.load %arg2[%c0, %c0_0] : memref<16x32xf32, #tpu.memory_space<vmem>>, vector<16x32xf32>
    %1 = arith.truncf %0 : vector<16x32xf32> to vector<16x32xbf16>
    %c0_1 = arith.constant 0 : index
    %c0_2 = arith.constant 0 : index
    %2 = vector.load %arg3[%c0_1, %c0_2] : memref<32x96xbf16, #tpu.memory_space<vmem>>, vector<32x96xbf16>
    %cst = arith.constant dense<0.000000e+00> : vector<16x96xf32>
    %3 = tpu.matmul %1, %2, %cst {dimension_numbers = #tpu.dot_dimension_numbers<[1], [0], [0], [1], [0, 0, 1, 1], [], []>} : vector<16x32xbf16>, vector<32x96xbf16>, vector<16x96xf32> -> vector<16x96xf32>
    %c0_3 = arith.constant 0 : index
    %c0_4 = arith.constant 0 : index
    %4 = vector.load %arg4[%c0_3, %c0_4] : memref<1x96xf32, #tpu.memory_space<vmem>>, vector<1x96xf32>
    %5 = vector.broadcast %4 : vector<1x96xf32> to vector<16x96xf32>
    %6 = arith.addf %3, %5 : vector<16x96xf32>
    %7 = arith.truncf %6 : vector<16x96xf32> to vector<16x96xbf16>
    %c0_5 = arith.constant 0 : index
    %c0_6 = arith.constant 0 : index
    %8 = vector.load %arg5[%c0_5, %c0_6] : memref<16x96xbf16, #tpu.memory_space<vmem>>, vector<16x96xbf16>
    tpu.vector_store %arg5[%c0_5, %c0_6], %7 {strides = array<i32>} : memref<16x96xbf16, #tpu.memory_space<vmem>>, vector<16x96xbf16>,
    return
  }
  func.func @transform_0(%arg0: i32, %arg1: i32) -> (i32, i32) {
    %c0_i32 = arith.constant 0 : i32
    %c0_i32_0 = arith.constant 0 : i32
    return %arg0, %c0_i32 : i32, i32
  }
  func.func @transform_1(%arg0: i32, %arg1: i32) -> (i32, i32) {
    %c0_i32 = arith.constant 0 : i32
    %c0_i32_0 = arith.constant 0 : i32
    return %c0_i32, %arg1 : i32, i32
  }
  func.func @transform_2(%arg0: i32, %arg1: i32) -> (i32, i32) {
    %c0_i32 = arith.constant 0 : i32
    %c0_i32_0 = arith.constant 0 : i32
    return %c0_i32, %arg1 : i32, i32
  }
  func.func @transform_3(%arg0: i32, %arg1: i32) -> (i32, i32) {
    %c0_i32 = arith.constant 0 : i32
    return %arg0, %arg1 : i32, i32
  }
}

</mosaic_0001>

<llo_original>
// kernel: tpu_custom_call.1
$region0: #{tpu_custom_call.1}
  #allocation0 [shape = 'u32[]', space=smem, size = 0x4, offset = 0x4, fixed_abs, tag = 'smem constant byte address 0x4 - core index']
  #allocation1 [shape = 'u32[72,128]{1,0:T(1,128)}', space=vmem, size = 0x9000, scoped, tag = 'internal scratch']
  %s0 = inlined_call_operand.hbm [shape: f32[16,32], index: 0, kind: input, shape index: {}]
  %s1 = inlined_call_operand.hbm [shape: bf16[32,96], index: 1, kind: input, shape index: {}]
  %s2 = inlined_call_operand.vmem [shape: f32[1,96], index: 2, kind: input, shape index: {}]
  %s3 = inlined_call_operand.hbm [shape: bf16[16,96], index: 3, kind: output, shape index: {}]
  %s4 = sld [smem:[#allocation0]]
  $region30: #{tpu_custom_call.1} parent=0
    _
  %s6 = ssub.s32 1, %s4
  %s7 = scalar_select 0, %s6, %s4
  $region1: #{tpu_custom_call.1} parent=0
    #allocation2 [shape = 'u8[8192]{0}', space=vmem, size = 0x2000, scoped, tag = 'input window, operand 0, single buffered']
    #allocation3 [shape = 's32[1]{0}', space=sflag, size = 0x4, scoped, tag = 'scoped memory for tpu_custom_call.1']
    #allocation4 [shape = 's32[1]{0}', space=sflag, size = 0x4, scoped, tag = 'scoped memory for tpu_custom_call.1']
    #allocation5 [shape = 'u8[8192]{0}', space=vmem, size = 0x2000, scoped, tag = 'input window, operand 1, single buffered']
    #allocation6 [shape = 's32[1]{0}', space=sflag, size = 0x4, scoped, tag = 'scoped memory for tpu_custom_call.1']
    #allocation7 [shape = 'u8[4096]{0}', space=vmem, size = 0x1000, scoped, tag = 'output window, operand 0, single buffered']
    %8 = vsyncpa [#allocation3], 0
    %9 = vsyncpa [#allocation6], 0
    %10 = vsyncpa [#allocation4], 0
    // Predicated region
    $region2: #{tpu_custom_call.1} parent=1 // pred_check
      _
    $region3: #{tpu_custom_call.1} parent=1 // pred_check_branch
      %12 = sbr.rel (0) target = $region5
    $region4: #{tpu_custom_call.1} parent=1 // pred_region
      %14 = vsyncadd [#allocation3], 0
      %s15 = sshll.u32 %s0, 4
      %s16 = int_to_ptr.hbm [resolvable:$true] %s15
      %s17 = sshll.u32 [#allocation2], 4
      %s18 = int_to_ptr.vmem [resolvable:$true] %s17
      %23 = dma.hbm_to_vmem [thread:$0]  %s16, 256, %s18, [#allocation3], 128, 128, 8
    $region5: #{tpu_custom_call.1} parent=1 // pred_fallthru
      _
    // Predicated region
    $region6: #{tpu_custom_call.1} parent=1 // pred_check
      _
    $region7: #{tpu_custom_call.1} parent=1 // pred_check_branch
      %25 = sbr.rel (0) target = $region9
    $region8: #{tpu_custom_call.1} parent=1 // pred_region
      %27 = vsyncadd [#allocation6], 0
      %s28 = sshll.u32 %s1, 4
      %s29 = int_to_ptr.hbm [resolvable:$true] %s28
      %s30 = sshll.u32 [#allocation5], 4
      %s31 = int_to_ptr.vmem [resolvable:$true] %s30
      %36 = dma.hbm_to_vmem [thread:$0]  %s29, 256, %s31, [#allocation6], 64, 64, 4
    $region9: #{tpu_custom_call.1} parent=1 // pred_fallthru
      _
    // Predicated region
    $region10: #{tpu_custom_call.1} parent=1 // pred_check
      _
    $region11: #{tpu_custom_call.1} parent=1 // pred_check_branch
      %38 = sbr.rel (0) target = $region13
    $region12: #{tpu_custom_call.1} parent=1 // pred_region
      _
    $region13: #{tpu_custom_call.1} parent=1 // pred_fallthru
      _
    // Predicated region
    $region14: #{tpu_custom_call.1} parent=1 // pred_check
      _
    $region15: #{tpu_custom_call.1} parent=1 // pred_check_branch
      %40 = sbr.rel (0) target = $region17
    $region16: #{tpu_custom_call.1} parent=1 // pred_region
      %42 = dma.done [#allocation3], 256
    $region17: #{tpu_custom_call.1} parent=1 // pred_fallthru
      _
    // Predicated region
    $region18: #{tpu_custom_call.1} parent=1 // pred_check
      _
    $region19: #{tpu_custom_call.1} parent=1 // pred_check_branch
      %44 = sbr.rel (0) target = $region21
    $region20: #{tpu_custom_call.1} parent=1 // pred_region
      %46 = dma.done [#allocation6], 256
    $region21: #{tpu_custom_call.1} parent=1 // pred_fallthru
      _
    %v48 = vld [vmem:[#allocation2] sm:$0xff]
    %v49 = vld [vmem:[#allocation2 + $0x8] sm:$0xff]
    %v50 = vpack.c.bf16 %v49, %v48
    %v51 = vld [vmem:[#allocation5] sm:$0xf]
    %v52 = vld [vmem:[#allocation5 + $0x4] sm:$0xf]
    %v53 = vld [vmem:[#allocation5 + $0x8] sm:$0xf]
    %v54 = vld [vmem:[#allocation5 + $0xc] sm:$0xf]
    %v55 = vld [vmem:[%s2] sm:$0x1]
    %v57 = vperm.slane %v55, 0
    %v63 = vunpack.c.l.b16 %v51
    %v64 = vunpack.c.l.b16 %v52
    %v65 = vunpack.c.l.b16 %v53
    %v66 = vunpack.c.l.b16 %v54
    %v67 = vpack.c.b16 %v64, %v63
    %v68 = vpack.c.b16 %v66, %v65
    %vm71 = vcmask 261120
    %v73 = vsel %vm71, %v50, 0
    %75 = vmatpush.bf16.msra.mxu0 0
    %76 = vmatpush.bf16.msra.mxu0 0
    %77 = vmatpush.bf16.msra.mxu0 0
    %78 = vmatpush.bf16.msra.mxu0 0
    %79 = vmatpush.bf16.msra.mxu0 0
    %80 = vmatpush.bf16.msra.mxu0 0
    %81 = vmatpush.bf16.msra.mxu0 %v68
    %82 = vmatpush.bf16.msra.mxu0 %v67
    %83 = vmatmul.bf16.gmra.mxu0 %v73
    %v84 = vpop.f32.mrf.mxu0
    %v85 = vadd.f32 %v57, %v84
    %v86 = vpop.f32.mrf.mxu0
    %v87 = vadd.f32 %v57, %v86
    %88 = vdwg.mxu0
    %v89 = vpack.c.bf16 %v85, %v85
    %v90 = vpack.c.bf16 %v87, %v87
    %vm91 = vcmask 781312
    %92 = vst.msk [vmem:[#allocation7] sm:$0xf] %vm91, %v89
    %93 = vst.msk [vmem:[#allocation7 + $0x4] sm:$0xf] %vm91, %v90
    // Predicated region
    $region22: #{tpu_custom_call.1} parent=1 // pred_check
      _
    $region23: #{tpu_custom_call.1} parent=1 // pred_check_branch
      %95 = sbr.rel (0) target = $region25
    $region24: #{tpu_custom_call.1} parent=1 // pred_region
      %97 = vsyncadd [#allocation4], 0
      %s98 = sshll.u32 [#allocation7], 4
      %s99 = int_to_ptr.vmem [resolvable:$true] %s98
      %s100 = sshll.u32 %s3, 4
      %s101 = int_to_ptr.hbm [resolvable:$true] %s100
      %106 = dma.vmem_to_hbm [thread:$0]  %s99, 128, %s101, [#allocation4], 64, 64, 4
    $region25: #{tpu_custom_call.1} parent=1 // pred_fallthru
      _
    // Predicated region
    $region26: #{tpu_custom_call.1} parent=1 // pred_check
      _
    $region27: #{tpu_custom_call.1} parent=1 // pred_check_branch
      %108 = sbr.rel (0) target = $region29
    $region28: #{tpu_custom_call.1} parent=1 // pred_region
      %110 = dma.done [#allocation4], 128
    $region29: #{tpu_custom_call.1} parent=1 // pred_fallthru
      _
    %111 = vsyncpa [#allocation3], 1
    %112 = vsyncpa [#allocation6], 1
    %113 = vsyncpa [#allocation4], 1

</llo_original>
